<compile_context>
chip_gen: v7x
topology: tpu7x:2x2x1
jax: 0.10.0
libtpu: 0.0.40
codegen_flags: <defaults>
</compile_context>

<pallas_src>
import jax
import jax.numpy as jnp
import numpy as np
from jax.experimental import pallas as pl
from jax.experimental.pallas import tpu as pltpu


def _discriminator_kernel(x_ref, w1_ref, b1_ref, w2_ref, b2_ref, w3_ref, b3_ref,
                          o_ref):
    """One batch tile, feature-major layout.  Weights stay VMEM-resident.

    x_ref : (10, tile_b) f32      w1_ref: (128, 10) bf16   b1_ref: (128, 1) f32
    w2_ref: (64, 128) bf16        b2_ref: (64, 1)  f32
    w3_ref: (64, 1)  f32          b3_ref: (1, 1)   f32 (SMEM scalar)
    o_ref : (1, tile_b) f32
    """
    # Layer 1: Linear(10 -> 128) + LeakyReLU(0.2).  bf16 MXU operands, f32 acc.
    x_bf = x_ref[...].astype(jnp.bfloat16)          # in-kernel cast (stays hidden)
    h1 = jnp.dot(w1_ref[...], x_bf, preferred_element_type=jnp.float32)  # (128,tb)
    h1 = h1 + b1_ref[...]
    h1 = jnp.where(h1 > 0, h1, 0.2 * h1)

    # Layer 2: Linear(128 -> 64) + LeakyReLU(0.2).
    h2 = jnp.dot(w2_ref[...], h1.astype(jnp.bfloat16),
                 preferred_element_type=jnp.float32)                     # (64,tb)
    h2 = h2 + b2_ref[...]
    h2 = jnp.where(h2 > 0, h2, 0.2 * h2)

    # Layer 3: Linear(64 -> 1) as VPU multiply + sublane (XLU) reduction, then
    # Sigmoid via EUP approx reciprocal.  Output block is lane-dense (1, tb).
    h3 = jnp.sum(h2 * w3_ref[...], axis=0, keepdims=True) + b3_ref[0, 0]  # (1,tb)
    o_ref[...] = pl.reciprocal(1.0 + jnp.exp(-h3), approx=True)


def _round_up(v, m):
    return ((v + m - 1) // m) * m


def discriminator_forward(x, params, *, max_tile_b=4096):
    """x: (B, 10) float32 -> (B, 1) float32."""
    w1, b1, w2, b2, w3, b3 = params
    B = x.shape[0]

    # Batch tile: multiple of 128 (lane-dense), capped at max_tile_b, and no
    # larger than ~B/2 so v7x's two TensorCores both get grid steps for big B.
    max_tile_b = max(128, (max_tile_b // 128) * 128)
    tile_b = min(max_tile_b, max(128, _round_up(pl.cdiv(B, 2), 128)))
    num_tiles = pl.cdiv(B, tile_b)
    b_pad = num_tiles * tile_b

    # Layout plumbing in the wrapper (pad ragged batch, go feature-major).
    if b_pad != B:
        x = jnp.pad(x, ((0, b_pad - B), (0, 0)))
    x_t = jnp.transpose(x)                                   # (10, b_pad)

    # One-time operand prep: transposed bf16 weights for the MXU, column biases
    # that broadcast over lanes, last layer as a (64, 1) column for the VPU
    # reduction, b3 as an SMEM scalar.
    w1_t = jnp.transpose(w1).astype(jnp.bfloat16)            # (128, 10)
    w2_t = jnp.transpose(w2).astype(jnp.bfloat16)            # (64, 128)
    b1_c = b1.reshape(128, 1).astype(jnp.float32)
    b2_c = b2.reshape(64, 1).astype(jnp.float32)
    w3_c = w3.reshape(64, 1).astype(jnp.float32)
    b3_s = b3.reshape(1, 1).astype(jnp.float32)

    def resident(shape):  # full-array VMEM-resident block
        return pl.BlockSpec(shape, lambda i: (0, 0))

    cost = pl.CostEstimate(
        flops=2 * B * (10 * 128 + 128 * 64 + 64),
        transcendentals=B,
        bytes_accessed=4 * B * (10 + 1)
        + 4 * (10 * 128 + 128 + 128 * 64 + 64 + 64 + 1),
    )

    out = pl.pallas_call(
        _discriminator_kernel,
        out_shape=jax.ShapeDtypeStruct((1, b_pad), jnp.float32),
        grid=(num_tiles,),
        in_specs=[
            pl.BlockSpec((10, tile_b), lambda i: (0, i)),        # x (pipelined)
            resident((128, 10)),                                 # w1^T
            resident((128, 1)),                                  # b1 column
            resident((64, 128)),                                 # w2^T
            resident((64, 1)),                                   # b2 column
            resident((64, 1)),                                   # w3 column
            pl.BlockSpec(memory_space=pltpu.MemorySpace.SMEM),   # b3 scalar
        ],
        out_specs=pl.BlockSpec((1, tile_b), lambda i: (0, i)),   # lane-dense out
        compiler_params=pltpu.CompilerParams(
            dimension_semantics=("parallel",),     # megacore split on v7x
            vmem_limit_bytes=32 * 1024 * 1024,     # plenty: ~4 MiB at tile_b=4096
        ),
        cost_estimate=cost,
    )(x_t, w1_t, b1_c, w2_t, b2_c, w3_c, b3_s)

    return jnp.transpose(out)[:B]                               # (B, 1)


def init_params(key):
    """Deterministic PyTorch-style init: U(-1/sqrt(fan_in), 1/sqrt(fan_in))."""
    dims = [(10, 128), (128, 64), (64, 1)]
    params = []
    keys = jax.random.split(key, 2 * len(dims))
    for i, (fan_in, fan_out) in enumerate(dims):
        bound = 1.0 / np.sqrt(fan_in)
        w = jax.random.uniform(keys[2 * i], (fan_in, fan_out),
                               minval=-bound, maxval=bound, dtype=jnp.float32)
        b = jax.random.uniform(keys[2 * i + 1], (1, fan_out),
                               minval=-bound, maxval=bound, dtype=jnp.float32)
        params += [w, b]
    return tuple(params)


def reference_forward(x, params):
    """Plain-JAX f32 reference with identical semantics (for verification)."""
    w1, b1, w2, b2, w3, b3 = params
    h = x @ w1 + b1
    h = jnp.where(h > 0, h, 0.2 * h)
    h = h @ w2 + b2
    h = jnp.where(h > 0, h, 0.2 * h)
    h = h @ w3 + b3
    return jax.nn.sigmoid(h)


if __name__ == "__main__":
    key = jax.random.PRNGKey(0)
    pkey, xkey, xkey2 = jax.random.split(key, 3)

    params = init_params(pkey)

    # Small batch (not a multiple of the tile) exercises the padding/tail path.
    x = jax.random.normal(xkey, (12, 10), dtype=jnp.float32)
    out = jax.block_until_ready(discriminator_forward(x, params))
    ref = reference_forward(x, params)
    assert out.shape == (12, 1)
    # bf16 matmul operands + approx reciprocal -> loose abs tol (output in [0,1]).
    np.testing.assert_allclose(np.asarray(out), np.asarray(ref),
                               rtol=0.0, atol=2e-2)

    # Slightly larger batch exercises the multi-tile ("parallel") grid path.
    x2 = jax.random.normal(xkey2, (300, 10), dtype=jnp.float32)
    out2 = jax.block_until_ready(discriminator_forward(x2, params))
    ref2 = reference_forward(x2, params)
    assert out2.shape == (300, 1)
    np.testing.assert_allclose(np.asarray(out2), np.asarray(ref2),
                               rtol=0.0, atol=2e-2)

    print("KERNEL_OK")
</pallas_src>

<mosaic_0001>
module attributes {stable_mosaic.version = 11 : i64} {
  func.func @_discriminator_kernel(%arg0: i32, %arg1: memref<10x128xf32, #tpu.memory_space<vmem>>, %arg2: memref<128x10xbf16, #tpu.memory_space<vmem>>, %arg3: memref<128x1xf32, #tpu.memory_space<vmem>>, %arg4: memref<64x128xbf16, #tpu.memory_space<vmem>>, %arg5: memref<64x1xf32, #tpu.memory_space<vmem>>, %arg6: memref<64x1xf32, #tpu.memory_space<vmem>>, %arg7: memref<1x1xf32, #tpu.memory_space<smem>>, %arg8: memref<1x128xf32, #tpu.memory_space<vmem>>) attributes {dimension_semantics = [#tpu.dimension_semantics<parallel>], iteration_bounds = array<i64: 1>, scalar_prefetch = 0 : i64, scratch_operands = 0 : i64, tpu.core_type = #tpu.core_type<tc>, window_params = [{transform_indices = @transform_0, window_bounds = array<i64: 10, 128>}, {pipeline_mode = #tpu.pipeline_mode<synchronous>, transform_indices = @transform_1, window_bounds = array<i64: 128, 10>}, {pipeline_mode = #tpu.pipeline_mode<synchronous>, transform_indices = @transform_2, window_bounds = array<i64: 128, 1>}, {pipeline_mode = #tpu.pipeline_mode<synchronous>, transform_indices = @transform_3, window_bounds = array<i64: 64, 128>}, {pipeline_mode = #tpu.pipeline_mode<synchronous>, transform_indices = @transform_4, window_bounds = array<i64: 64, 1>}, {pipeline_mode = #tpu.pipeline_mode<synchronous>, transform_indices = @transform_5, window_bounds = array<i64: 64, 1>}, {transform_indices = @transform_6, window_bounds = array<i64: 1, 1>}, {transform_indices = @transform_7, window_bounds = array<i64: 1, 128>}]} {
    %c0 = arith.constant 0 : index
    %c0_0 = arith.constant 0 : index
    %0 = vector.load %arg1[%c0, %c0_0] : memref<10x128xf32, #tpu.memory_space<vmem>>, vector<10x128xf32>
    %1 = arith.truncf %0 : vector<10x128xf32> to vector<10x128xbf16>
    %c0_1 = arith.constant 0 : index
    %c0_2 = arith.constant 0 : index
    %2 = vector.load %arg2[%c0_1, %c0_2] : memref<128x10xbf16, #tpu.memory_space<vmem>>, vector<128x10xbf16>
    %cst = arith.constant dense<0.000000e+00> : vector<128x128xf32>
    %3 = tpu.matmul %2, %1, %cst {dimension_numbers = #tpu.dot_dimension_numbers<[1], [0], [0], [1], [0, 0, 1, 1], [], []>} : vector<128x10xbf16>, vector<10x128xbf16>, vector<128x128xf32> -> vector<128x128xf32>
    %c0_3 = arith.constant 0 : index
    %c0_4 = arith.constant 0 : index
    %4 = vector.load %arg3[%c0_3, %c0_4] : memref<128x1xf32, #tpu.memory_space<vmem>>, vector<128x1xf32>
    %5 = vector.broadcast %4 : vector<128x1xf32> to vector<128x128xf32>
    %6 = arith.addf %3, %5 : vector<128x128xf32>
    %cst_5 = arith.constant 0.000000e+00 : f32
    %7 = vector.broadcast %cst_5 : f32 to vector<128x128xf32>
    %8 = arith.cmpf ogt, %6, %7 : vector<128x128xf32>
    %cst_6 = arith.constant 2.000000e-01 : f32
    %9 = vector.broadcast %cst_6 : f32 to vector<128x128xf32>
    %10 = arith.mulf %9, %6 : vector<128x128xf32>
    %11 = arith.select %8, %6, %10 : vector<128x128xi1>, vector<128x128xf32>
    %c0_7 = arith.constant 0 : index
    %c0_8 = arith.constant 0 : index
    %12 = vector.load %arg4[%c0_7, %c0_8] : memref<64x128xbf16, #tpu.memory_space<vmem>>, vector<64x128xbf16>
    %13 = arith.truncf %11 : vector<128x128xf32> to vector<128x128xbf16>
    %cst_9 = arith.constant dense<0.000000e+00> : vector<64x128xf32>
    %14 = tpu.matmul %12, %13, %cst_9 {dimension_numbers = #tpu.dot_dimension_numbers<[1], [0], [0], [1], [0, 0, 1, 1], [], []>} : vector<64x128xbf16>, vector<128x128xbf16>, vector<64x128xf32> -> vector<64x128xf32>
    %c0_10 = arith.constant 0 : index
    %c0_11 = arith.constant 0 : index
    %15 = vector.load %arg5[%c0_10, %c0_11] : memref<64x1xf32, #tpu.memory_space<vmem>>, vector<64x1xf32>
    %16 = vector.broadcast %15 : vector<64x1xf32> to vector<64x128xf32>
    %17 = arith.addf %14, %16 : vector<64x128xf32>
    %cst_12 = arith.constant 0.000000e+00 : f32
    %18 = vector.broadcast %cst_12 : f32 to vector<64x128xf32>
    %19 = arith.cmpf ogt, %17, %18 : vector<64x128xf32>
    %cst_13 = arith.constant 2.000000e-01 : f32
    %20 = vector.broadcast %cst_13 : f32 to vector<64x128xf32>
    %21 = arith.mulf %20, %17 : vector<64x128xf32>
    %22 = arith.select %19, %17, %21 : vector<64x128xi1>, vector<64x128xf32>
    %c0_14 = arith.constant 0 : index
    %c0_15 = arith.constant 0 : index
    %23 = vector.load %arg6[%c0_14, %c0_15] : memref<64x1xf32, #tpu.memory_space<vmem>>, vector<64x1xf32>
    %24 = vector.broadcast %23 : vector<64x1xf32> to vector<64x128xf32>
    %25 = arith.mulf %22, %24 : vector<64x128xf32>
    %cst_16 = arith.constant dense<0.000000e+00> : vector<128xf32>
    %26 = vector.multi_reduction <add>, %25, %cst_16 [0] : vector<64x128xf32> to vector<128xf32>
    %27 = vector.shape_cast %26 : vector<128xf32> to vector<1x128xf32>
    %c0_17 = arith.constant 0 : index
    %c0_18 = arith.constant 0 : index
    %28 = memref.load %arg7[%c0_17, %c0_18] : memref<1x1xf32, #tpu.memory_space<smem>>
    %29 = vector.broadcast %28 : f32 to vector<1x128xf32>
    %30 = arith.addf %27, %29 : vector<1x128xf32>
    %cst_19 = arith.constant 0.000000e+00 : f32
    %31 = vector.broadcast %cst_19 : f32 to vector<1x128xf32>
    %32 = arith.subf %31, %30 : vector<1x128xf32>
    %33 = math.exp %32 : vector<1x128xf32>
    %cst_20 = arith.constant 1.000000e+00 : f32
    %34 = vector.broadcast %cst_20 : f32 to vector<1x128xf32>
    %35 = arith.addf %34, %33 : vector<1x128xf32>
    %36 = tpu.reciprocal %35 {approx = true} : vector<1x128xf32> -> vector<1x128xf32>
    %c0_21 = arith.constant 0 : index
    %c0_22 = arith.constant 0 : index
    %37 = vector.load %arg8[%c0_21, %c0_22] : memref<1x128xf32, #tpu.memory_space<vmem>>, vector<1x128xf32>
    tpu.vector_store %arg8[%c0_21, %c0_22], %36 {strides = array<i32>} : memref<1x128xf32, #tpu.memory_space<vmem>>, vector<1x128xf32>,
    return
  }
  func.func @transform_0(%arg0: i32) -> (i32, i32) {
    %c0_i32 = arith.constant 0 : i32
    %c0_i32_0 = arith.constant 0 : i32
    return %c0_i32, %arg0 : i32, i32
  }
  func.func @transform_1(%arg0: i32) -> (i32, i32) {
    %c0_i32 = arith.constant 0 : i32
    %c0_i32_0 = arith.constant 0 : i32
    %c0_i32_1 = arith.constant 0 : i32
    return %c0_i32, %c0_i32_0 : i32, i32
  }
  func.func @transform_2(%arg0: i32) -> (i32, i32) {
    %c0_i32 = arith.constant 0 : i32
    %c0_i32_0 = arith.constant 0 : i32
    %c0_i32_1 = arith.constant 0 : i32
    return %c0_i32, %c0_i32_0 : i32, i32
  }
  func.func @transform_3(%arg0: i32) -> (i32, i32) {
    %c0_i32 = arith.constant 0 : i32
    %c0_i32_0 = arith.constant 0 : i32
    %c0_i32_1 = arith.constant 0 : i32
    return %c0_i32, %c0_i32_0 : i32, i32
  }
  func.func @transform_4(%arg0: i32) -> (i32, i32) {
    %c0_i32 = arith.constant 0 : i32
    %c0_i32_0 = arith.constant 0 : i32
    %c0_i32_1 = arith.constant 0 : i32
    return %c0_i32, %c0_i32_0 : i32, i32
  }
  func.func @transform_5(%arg0: i32) -> (i32, i32) {
    %c0_i32 = arith.constant 0 : i32
    %c0_i32_0 = arith.constant 0 : i32
    %c0_i32_1 = arith.constant 0 : i32
    return %c0_i32, %c0_i32_0 : i32, i32
  }
  func.func @transform_6(%arg0: i32) -> (i32, i32) {
    %c0_i32 = arith.constant 0 : i32
    %c0_i32_0 = arith.constant 0 : i32
    %c0_i32_1 = arith.constant 0 : i32
    return %c0_i32, %c0_i32_0 : i32, i32
  }
  func.func @transform_7(%arg0: i32) -> (i32, i32) {
    %c0_i32 = arith.constant 0 : i32
    %c0_i32_0 = arith.constant 0 : i32
    return %c0_i32, %arg0 : i32, i32
  }
}

</mosaic_0001>

<llo_original>
// kernel: tpu_custom_call.1
$region0: #{tpu_custom_call.1}
  #allocation0 [shape = 'u32[]', space=smem, size = 0x4, offset = 0x4, fixed_abs, tag = 'smem constant byte address 0x4 - core index']
  #allocation1 [shape = 'u32[144,128]{1,0:T(1,128)}', space=vmem, size = 0x12000, scoped, tag = 'internal scratch']
  #allocation2 [shape = 'f32[1,1]{1,0:T(1,128)S(6)}', space=smem, size = 0x200, scoped, tag = 'scoped memory for tpu_custom_call.1']
  %s0 = inlined_call_operand.vmem [shape: f32[10,128], index: 0, kind: input, shape index: {}]
  %s1 = inlined_call_operand.vmem [shape: bf16[128,10], index: 1, kind: input, shape index: {}]
  %s2 = inlined_call_operand.vmem [shape: f32[128,1], index: 2, kind: input, shape index: {}]
  %s3 = inlined_call_operand.vmem [shape: bf16[64,128], index: 3, kind: input, shape index: {}]
  %s4 = inlined_call_operand.vmem [shape: f32[64,1], index: 4, kind: input, shape index: {}]
  %s5 = inlined_call_operand.vmem [shape: f32[64,1], index: 5, kind: input, shape index: {}]
  %s6 = inlined_call_operand.<no memory space> [shape: f32[1,1], index: 6, kind: input, shape index: {}]
  %s7 = inlined_call_operand.hbm [shape: f32[1,128], index: 7, kind: output, shape index: {}]
  %s8 = sld [smem:[#allocation0]]
  $region38: #{tpu_custom_call.1} parent=0
    _
  %s10 = ssub.s32 1, %s8
  %s11 = scalar_select 0, %s10, %s8
  %12 = sst [smem:[#allocation2]] %s6
  $region1: #{tpu_custom_call.1} parent=0
    #allocation3 [shape = 'u8[512]{0}', space=vmem, size = 0x400, scoped, tag = 'output window, operand 0, single buffered']
    #allocation4 [shape = 's32[1]{0}', space=sflag, size = 0x4, scoped, tag = 'scoped memory for tpu_custom_call.1']
    %13 = vsyncpa [#allocation4], 0
    // Predicated region
    $region2: #{tpu_custom_call.1} parent=1 // pred_check
      _
    $region3: #{tpu_custom_call.1} parent=1 // pred_check_branch
      %15 = sbr.rel (0) target = $region5
    $region4: #{tpu_custom_call.1} parent=1 // pred_region
      _
    $region5: #{tpu_custom_call.1} parent=1 // pred_fallthru
      _
    // Predicated region
    $region6: #{tpu_custom_call.1} parent=1 // pred_check
      _
    $region7: #{tpu_custom_call.1} parent=1 // pred_check_branch
      %17 = sbr.rel (0) target = $region9
    $region8: #{tpu_custom_call.1} parent=1 // pred_region
      _
    $region9: #{tpu_custom_call.1} parent=1 // pred_fallthru
      _
    // Predicated region
    $region10: #{tpu_custom_call.1} parent=1 // pred_check
      _
    $region11: #{tpu_custom_call.1} parent=1 // pred_check_branch
      %19 = sbr.rel (0) target = $region13
    $region12: #{tpu_custom_call.1} parent=1 // pred_region
      _
    $region13: #{tpu_custom_call.1} parent=1 // pred_fallthru
      _
    // Predicated region
    $region14: #{tpu_custom_call.1} parent=1 // pred_check
      _
    $region15: #{tpu_custom_call.1} parent=1 // pred_check_branch
      %21 = sbr.rel (0) target = $region17
    $region16: #{tpu_custom_call.1} parent=1 // pred_region
      _
    $region17: #{tpu_custom_call.1} parent=1 // pred_fallthru
      _
    // Predicated region
    $region18: #{tpu_custom_call.1} parent=1 // pred_check
      _
    $region19: #{tpu_custom_call.1} parent=1 // pred_check_branch
      %23 = sbr.rel (0) target = $region21
    $region20: #{tpu_custom_call.1} parent=1 // pred_region
      _
    $region21: #{tpu_custom_call.1} parent=1 // pred_fallthru
      _
    // Predicated region
    $region22: #{tpu_custom_call.1} parent=1 // pred_check
      _
    $region23: #{tpu_custom_call.1} parent=1 // pred_check_branch
      %25 = sbr.rel (0) target = $region25
    $region24: #{tpu_custom_call.1} parent=1 // pred_region
      _
    $region25: #{tpu_custom_call.1} parent=1 // pred_fallthru
      _
    // Predicated region
    $region26: #{tpu_custom_call.1} parent=1 // pred_check
      _
    $region27: #{tpu_custom_call.1} parent=1 // pred_check_branch
      %27 = sbr.rel (0) target = $region29
    $region28: #{tpu_custom_call.1} parent=1 // pred_region
      _
    $region29: #{tpu_custom_call.1} parent=1 // pred_fallthru
      _
    %v29 = vld [vmem:[%s0] sm:$0xff]
    %v30 = vld [vmem:[%s0 + $0x8] sm:$0x3]
    %v31 = vpack.c.bf16 %v30, %v29
    %v32 = vld [vmem:[%s1] sm:$0xf]
    %v33 = vld [vmem:[%s1 + $0x4] sm:$0xf]
    %v34 = vld [vmem:[%s1 + $0x8] sm:$0xf]
    %v35 = vld [vmem:[%s1 + $0xc] sm:$0xf]
    %v36 = vld [vmem:[%s1 + $0x10] sm:$0xf]
    %v37 = vld [vmem:[%s1 + $0x14] sm:$0xf]
    %v38 = vld [vmem:[%s1 + $0x18] sm:$0xf]
    %v39 = vld [vmem:[%s1 + $0x1c] sm:$0xf]
    %v40 = vld [vmem:[%s1 + $0x20] sm:$0xf]
    %v41 = vld [vmem:[%s1 + $0x24] sm:$0xf]
    %v42 = vld [vmem:[%s1 + $0x28] sm:$0xf]
    %v43 = vld [vmem:[%s1 + $0x2c] sm:$0xf]
    %v44 = vld [vmem:[%s1 + $0x30] sm:$0xf]
    %v45 = vld [vmem:[%s1 + $0x34] sm:$0xf]
    %v46 = vld [vmem:[%s1 + $0x38] sm:$0xf]
    %v47 = vld [vmem:[%s1 + $0x3c] sm:$0xf]
    %v48 = vld [vmem:[%s2] sm:$0xff]
    %v49 = vld [vmem:[%s2 + $0x8] sm:$0xff]
    %v50 = vld [vmem:[%s2 + $0x10] sm:$0xff]
    %v51 = vld [vmem:[%s2 + $0x18] sm:$0xff]
    %v52 = vld [vmem:[%s2 + $0x20] sm:$0xff]
    %v53 = vld [vmem:[%s2 + $0x28] sm:$0xff]
    %v54 = vld [vmem:[%s2 + $0x30] sm:$0xff]
    %v55 = vld [vmem:[%s2 + $0x38] sm:$0xff]
    %v56 = vld [vmem:[%s2 + $0x40] sm:$0xff]
    %v57 = vld [vmem:[%s2 + $0x48] sm:$0xff]
    %v58 = vld [vmem:[%s2 + $0x50] sm:$0xff]
    %v59 = vld [vmem:[%s2 + $0x58] sm:$0xff]
    %v60 = vld [vmem:[%s2 + $0x60] sm:$0xff]
    %v61 = vld [vmem:[%s2 + $0x68] sm:$0xff]
    %v62 = vld [vmem:[%s2 + $0x70] sm:$0xff]
    %v63 = vld [vmem:[%s2 + $0x78] sm:$0xff]
    %65 = vset.pattern.permute.xlu0 0
    %66 = vperm.xlu0 %65, %v48
    %v67 = vpop.permute.xlu0 %66
    %70 = vset.pattern.permute.xlu0 0
    %71 = vperm.xlu0 %70, %v49
    %v72 = vpop.permute.xlu0 %71
    %75 = vset.pattern.permute.xlu0 0
    %76 = vperm.xlu0 %75, %v50
    %v77 = vpop.permute.xlu0 %76
    %80 = vset.pattern.permute.xlu0 0
    %81 = vperm.xlu0 %80, %v51
    %v82 = vpop.permute.xlu0 %81
    %85 = vset.pattern.permute.xlu0 0
    %86 = vperm.xlu0 %85, %v52
    %v87 = vpop.permute.xlu0 %86
    %90 = vset.pattern.permute.xlu0 0
    %91 = vperm.xlu0 %90, %v53
    %v92 = vpop.permute.xlu0 %91
    %95 = vset.pattern.permute.xlu0 0
    %96 = vperm.xlu0 %95, %v54
    %v97 = vpop.permute.xlu0 %96
    %100 = vset.pattern.permute.xlu0 0
    %101 = vperm.xlu0 %100, %v55
    %v102 = vpop.permute.xlu0 %101
    %105 = vset.pattern.permute.xlu0 0
    %106 = vperm.xlu0 %105, %v56
    %v107 = vpop.permute.xlu0 %106
    %110 = vset.pattern.permute.xlu0 0
    %111 = vperm.xlu0 %110, %v57
    %v112 = vpop.permute.xlu0 %111
    %115 = vset.pattern.permute.xlu0 0
    %116 = vperm.xlu0 %115, %v58
    %v117 = vpop.permute.xlu0 %116
    %120 = vset.pattern.permute.xlu0 0
    %121 = vperm.xlu0 %120, %v59
    %v122 = vpop.permute.xlu0 %121
    %125 = vset.pattern.permute.xlu0 0
    %126 = vperm.xlu0 %125, %v60
    %v127 = vpop.permute.xlu0 %126
    %130 = vset.pattern.permute.xlu0 0
    %131 = vperm.xlu0 %130, %v61
    %v132 = vpop.permute.xlu0 %131
    %135 = vset.pattern.permute.xlu0 0
    %136 = vperm.xlu0 %135, %v62
    %v137 = vpop.permute.xlu0 %136
    %140 = vset.pattern.permute.xlu0 0
    %141 = vperm.xlu0 %140, %v63
    %v142 = vpop.permute.xlu0 %141
    %v160 = vunpack.c.l.b16 %v32
    %v161 = vunpack.c.l.b16 %v33
    %v162 = vunpack.c.l.b16 %v34
    %v163 = vunpack.c.l.b16 %v35
    %v164 = vunpack.c.l.b16 %v36
    %v165 = vunpack.c.l.b16 %v37
    %v166 = vunpack.c.l.b16 %v38
    %v167 = vunpack.c.l.b16 %v39
    %v168 = vunpack.c.l.b16 %v40
    %v169 = vunpack.c.l.b16 %v41
    %v170 = vunpack.c.l.b16 %v42
    %v171 = vunpack.c.l.b16 %v43
    %v172 = vunpack.c.l.b16 %v44
    %v173 = vunpack.c.l.b16 %v45
    %v174 = vunpack.c.l.b16 %v46
    %v175 = vunpack.c.l.b16 %v47
    %v176 = vpack.c.b16 %v161, %v160
    %v177 = vpack.c.b16 %v163, %v162
    %v178 = vpack.c.b16 %v165, %v164
    %v179 = vpack.c.b16 %v167, %v166
    %v180 = vpack.c.b16 %v169, %v168
    %v181 = vpack.c.b16 %v171, %v170
    %v182 = vpack.c.b16 %v173, %v172
    %v183 = vpack.c.b16 %v175, %v174
    %vm184 = vcmask 80896
    %v186 = vsel %vm184, %v176, 0
    %v189 = vsel %vm184, %v177, 0
    %v192 = vsel %vm184, %v178, 0
    %v195 = vsel %vm184, %v179, 0
    %v198 = vsel %vm184, %v180, 0
    %v201 = vsel %vm184, %v181, 0
    %v204 = vsel %vm184, %v182, 0
    %v207 = vsel %vm184, %v183, 0
    %vm209 = vcmask 1044480
    %v211 = vsel %vm209, %v31, 0
    %213 = vmatprep.subr.bf16.mxu0 0
    %214 = vmatpush1.bf16.msra.mxu0 %v211
    %215 = vmatprep.subr.bf16.mxu0 0
    %216 = vmatpush1.bf16.msra.mxu0 0
    %217 = vmatprep.subr.bf16.mxu0 0
    %218 = vmatpush1.bf16.msra.mxu0 0
    %219 = vmatprep.subr.bf16.mxu0 0
    %220 = vmatpush1.bf16.msra.mxu0 0
    %221 = vmatprep.subr.bf16.mxu0 0
    %222 = vmatpush1.bf16.msra.mxu0 0
    %223 = vmatprep.subr.bf16.mxu0 0
    %224 = vmatpush1.bf16.msra.mxu0 0
    %225 = vmatprep.subr.bf16.mxu0 0
    %226 = vmatpush1.bf16.msra.mxu0 0
    %227 = vmatprep.subr.bf16.mxu0 0
    %228 = vmatpush1.bf16.msra.mxu0 0
    %229 = vmatprep.subr.bf16.mxu0 0
    %230 = vmatpush1.bf16.msra.mxu0 0
    %231 = vmatprep.subr.bf16.mxu0 0
    %232 = vmatpush1.bf16.msra.mxu0 0
    %233 = vmatprep.subr.bf16.mxu0 0
    %234 = vmatpush1.bf16.msra.mxu0 0
    %235 = vmatprep.subr.bf16.mxu0 0
    %236 = vmatpush1.bf16.msra.mxu0 0
    %237 = vmatprep.subr.bf16.mxu0 0
    %238 = vmatpush1.bf16.msra.mxu0 0
    %239 = vmatprep.subr.bf16.mxu0 0
    %240 = vmatpush1.bf16.msra.mxu0 0
    %241 = vmatprep.subr.bf16.mxu0 0
    %242 = vmatpush1.bf16.msra.mxu0 0
    %243 = vmatprep.subr.bf16.mxu0 0
    %244 = vmatpush1.bf16.msra.mxu0 0
    %245 = vmatprep.mubr.bf16.mxu0 0
    %246 = vmatmul.mubr.bf16.gmra.mrb[0].mxu0 %v186
    %v247 = vpop.f32.mrb[0].mxu0
    %v248 = vadd.f32 %v67, %v247
    %v249 = vpop.f32.mrb[0].mxu0
    %v250 = vpop.f32.mrb[0].mxu0
    %v251 = vadd.f32 %v72, %v250
    %v252 = vpop.f32.mrb[0].mxu0
    %253 = vmatprep.mubr.bf16.mxu0 0
    %254 = vmatmul.mubr.bf16.gmra.mrb[0].mxu0 %v189
    %v255 = vpop.f32.mrb[0].mxu0
    %v256 = vadd.f32 %v77, %v255
    %v257 = vpop.f32.mrb[0].mxu0
    %v258 = vpop.f32.mrb[0].mxu0
    %v259 = vadd.f32 %v82, %v258
    %v260 = vpop.f32.mrb[0].mxu0
    %261 = vmatprep.mubr.bf16.mxu0 0
    %262 = vmatmul.mubr.bf16.gmra.mrb[0].mxu0 %v192
    %v263 = vpop.f32.mrb[0].mxu0
    %v264 = vadd.f32 %v87, %v263
    %v265 = vpop.f32.mrb[0].mxu0
    %v266 = vpop.f32.mrb[0].mxu0
    %v267 = vadd.f32 %v92, %v266
    %v268 = vpop.f32.mrb[0].mxu0
    %269 = vmatprep.mubr.bf16.mxu0 0
    %270 = vmatmul.mubr.bf16.gmra.mrb[0].mxu0 %v195
    %v271 = vpop.f32.mrb[0].mxu0
    %v272 = vadd.f32 %v97, %v271
    %v273 = vpop.f32.mrb[0].mxu0
    %v274 = vpop.f32.mrb[0].mxu0
    %v275 = vadd.f32 %v102, %v274
    %v276 = vpop.f32.mrb[0].mxu0
    %277 = vmatprep.mubr.bf16.mxu0 0
    %278 = vmatmul.mubr.bf16.gmra.mrb[0].mxu0 %v198
    %v279 = vpop.f32.mrb[0].mxu0
    %v280 = vadd.f32 %v107, %v279
    %v281 = vpop.f32.mrb[0].mxu0
    %v282 = vpop.f32.mrb[0].mxu0
    %v283 = vadd.f32 %v112, %v282
    %v284 = vpop.f32.mrb[0].mxu0
    %285 = vmatprep.mubr.bf16.mxu0 0
    %286 = vmatmul.mubr.bf16.gmra.mrb[0].mxu0 %v201
    %v287 = vpop.f32.mrb[0].mxu0
    %v288 = vadd.f32 %v117, %v287
    %v289 = vpop.f32.mrb[0].mxu0
    %v290 = vpop.f32.mrb[0].mxu0
    %v291 = vadd.f32 %v122, %v290
    %v292 = vpop.f32.mrb[0].mxu0
    %293 = vmatprep.mubr.bf16.mxu0 0
    %294 = vmatmul.mubr.bf16.gmra.mrb[0].mxu0 %v204
    %v295 = vpop.f32.mrb[0].mxu0
    %v296 = vadd.f32 %v127, %v295
    %v297 = vpop.f32.mrb[0].mxu0
    %v298 = vpop.f32.mrb[0].mxu0
    %v299 = vadd.f32 %v132, %v298
    %v300 = vpop.f32.mrb[0].mxu0
    %301 = vmatprep.mubr.bf16.mxu0 0
    %302 = vmatmul.mubr.bf16.gmra.mrb[0].mxu0 %v207
    %v303 = vpop.f32.mrb[0].mxu0
    %v304 = vadd.f32 %v137, %v303
    %v305 = vpop.f32.mrb[0].mxu0
    %v306 = vpop.f32.mrb[0].mxu0
    %v307 = vadd.f32 %v142, %v306
    %v308 = vpop.f32.mrb[0].mxu0
    %309 = vdwg.mxu0
    %vm310 = vcmp.gt.f32.partialorder %v248, 0.0
    %vm311 = vcmp.gt.f32.partialorder %v251, 0.0
    %vm312 = vcmp.gt.f32.partialorder %v256, 0.0
    %vm313 = vcmp.gt.f32.partialorder %v259, 0.0
    %vm314 = vcmp.gt.f32.partialorder %v264, 0.0
    %vm315 = vcmp.gt.f32.partialorder %v267, 0.0
    %vm316 = vcmp.gt.f32.partialorder %v272, 0.0
    %vm317 = vcmp.gt.f32.partialorder %v275, 0.0
    %vm318 = vcmp.gt.f32.partialorder %v280, 0.0
    %vm319 = vcmp.gt.f32.partialorder %v283, 0.0
    %vm320 = vcmp.gt.f32.partialorder %v288, 0.0
    %vm321 = vcmp.gt.f32.partialorder %v291, 0.0
    %vm322 = vcmp.gt.f32.partialorder %v296, 0.0
    %vm323 = vcmp.gt.f32.partialorder %v299, 0.0
    %vm324 = vcmp.gt.f32.partialorder %v304, 0.0
    %vm325 = vcmp.gt.f32.partialorder %v307, 0.0
    %v326 = vmul.f32 %v248, 0.2
    %v327 = vmul.f32 %v251, 0.2
    %v328 = vmul.f32 %v256, 0.2
    %v329 = vmul.f32 %v259, 0.2
    %v330 = vmul.f32 %v264, 0.2
    %v331 = vmul.f32 %v267, 0.2
    %v332 = vmul.f32 %v272, 0.2
    %v333 = vmul.f32 %v275, 0.2
    %v334 = vmul.f32 %v280, 0.2
    %v335 = vmul.f32 %v283, 0.2
    %v336 = vmul.f32 %v288, 0.2
    %v337 = vmul.f32 %v291, 0.2
    %v338 = vmul.f32 %v296, 0.2
    %v339 = vmul.f32 %v299, 0.2
    %v340 = vmul.f32 %v304, 0.2
    %v341 = vmul.f32 %v307, 0.2
    %v342 = vsel %vm310, %v248, %v326
    %v343 = vsel %vm311, %v251, %v327
    %v344 = vsel %vm312, %v256, %v328
    %v345 = vsel %vm313, %v259, %v329
    %v346 = vsel %vm314, %v264, %v330
    %v347 = vsel %vm315, %v267, %v331
    %v348 = vsel %vm316, %v272, %v332
    %v349 = vsel %vm317, %v275, %v333
    %v350 = vsel %vm318, %v280, %v334
    %v351 = vsel %vm319, %v283, %v335
    %v352 = vsel %vm320, %v288, %v336
    %v353 = vsel %vm321, %v291, %v337
    %v354 = vsel %vm322, %v296, %v338
    %v355 = vsel %vm323, %v299, %v339
    %v356 = vsel %vm324, %v304, %v340
    %v357 = vsel %vm325, %v307, %v341
    %v358 = vld [vmem:[%s3] sm:$0xf]
    %v359 = vld [vmem:[%s3 + $0x4] sm:$0xf]
    %v360 = vld [vmem:[%s3 + $0x8] sm:$0xf]
    %v361 = vld [vmem:[%s3 + $0xc] sm:$0xf]
    %v362 = vld [vmem:[%s3 + $0x10] sm:$0xf]
    %v363 = vld [vmem:[%s3 + $0x14] sm:$0xf]
    %v364 = vld [vmem:[%s3 + $0x18] sm:$0xf]
    %v365 = vld [vmem:[%s3 + $0x1c] sm:$0xf]
    %v366 = vpack.c.bf16 %v343, %v342
    %v367 = vpack.c.bf16 %v345, %v344
    %v368 = vpack.c.bf16 %v347, %v346
    %v369 = vpack.c.bf16 %v349, %v348
    %v370 = vpack.c.bf16 %v351, %v350
    %v371 = vpack.c.bf16 %v353, %v352
    %v372 = vpack.c.bf16 %v355, %v354
    %v373 = vpack.c.bf16 %v357, %v356
    %v374 = vld [vmem:[%s4] sm:$0xff]
    %v375 = vld [vmem:[%s4 + $0x8] sm:$0xff]
    %v376 = vld [vmem:[%s4 + $0x10] sm:$0xff]
    %v377 = vld [vmem:[%s4 + $0x18] sm:$0xff]
    %v378 = vld [vmem:[%s4 + $0x20] sm:$0xff]
    %v379 = vld [vmem:[%s4 + $0x28] sm:$0xff]
    %v380 = vld [vmem:[%s4 + $0x30] sm:$0xff]
    %v381 = vld [vmem:[%s4 + $0x38] sm:$0xff]
    %383 = vset.pattern.permute.xlu0 0
    %384 = vperm.xlu0 %383, %v374
    %v385 = vpop.permute.xlu0 %384
    %388 = vset.pattern.permute.xlu0 0
    %389 = vperm.xlu0 %388, %v375
    %v390 = vpop.permute.xlu0 %389
    %393 = vset.pattern.permute.xlu0 0
    %394 = vperm.xlu0 %393, %v376
    %v395 = vpop.permute.xlu0 %394
    %398 = vset.pattern.permute.xlu0 0
    %399 = vperm.xlu0 %398, %v377
    %v400 = vpop.permute.xlu0 %399
    %403 = vset.pattern.permute.xlu0 0
    %404 = vperm.xlu0 %403, %v378
    %v405 = vpop.permute.xlu0 %404
    %408 = vset.pattern.permute.xlu0 0
    %409 = vperm.xlu0 %408, %v379
    %v410 = vpop.permute.xlu0 %409
    %413 = vset.pattern.permute.xlu0 0
    %414 = vperm.xlu0 %413, %v380
    %v415 = vpop.permute.xlu0 %414
    %418 = vset.pattern.permute.xlu0 0
    %419 = vperm.xlu0 %418, %v381
    %v420 = vpop.permute.xlu0 %419
    %v430 = vunpack.c.l.b16 %v358
    %v431 = vunpack.c.l.b16 %v359
    %v432 = vunpack.c.l.b16 %v360
    %v433 = vunpack.c.l.b16 %v361
    %v434 = vunpack.c.l.b16 %v362
    %v435 = vunpack.c.l.b16 %v363
    %v436 = vunpack.c.l.b16 %v364
    %v437 = vunpack.c.l.b16 %v365
    %v438 = vpack.c.b16 %v431, %v430
    %v439 = vpack.c.b16 %v433, %v432
    %v440 = vpack.c.b16 %v435, %v434
    %v441 = vpack.c.b16 %v437, %v436
    %446 = vmatprep.subr.bf16.mxu0 0
    %447 = vmatpush1.bf16.msra.mxu0 %v366
    %448 = vmatprep.subr.bf16.mxu0 0
    %449 = vmatpush1.bf16.msra.mxu0 %v367
    %450 = vmatprep.subr.bf16.mxu0 0
    %451 = vmatpush1.bf16.msra.mxu0 %v368
    %452 = vmatprep.subr.bf16.mxu0 0
    %453 = vmatpush1.bf16.msra.mxu0 %v369
    %454 = vmatprep.subr.bf16.mxu0 0
    %455 = vmatpush1.bf16.msra.mxu0 %v370
    %456 = vmatprep.subr.bf16.mxu0 0
    %457 = vmatpush1.bf16.msra.mxu0 %v371
    %458 = vmatprep.subr.bf16.mxu0 0
    %459 = vmatpush1.bf16.msra.mxu0 %v372
    %460 = vmatprep.subr.bf16.mxu0 0
    %461 = vmatpush1.bf16.msra.mxu0 %v373
    %462 = vmatprep.subr.bf16.mxu0 0
    %463 = vmatpush1.bf16.msra.mxu0 0
    %464 = vmatprep.subr.bf16.mxu0 0
    %465 = vmatpush1.bf16.msra.mxu0 0
    %466 = vmatprep.subr.bf16.mxu0 0
    %467 = vmatpush1.bf16.msra.mxu0 0
    %468 = vmatprep.subr.bf16.mxu0 0
    %469 = vmatpush1.bf16.msra.mxu0 0
    %470 = vmatprep.subr.bf16.mxu0 0
    %471 = vmatpush1.bf16.msra.mxu0 0
    %472 = vmatprep.subr.bf16.mxu0 0
    %473 = vmatpush1.bf16.msra.mxu0 0
    %474 = vmatprep.subr.bf16.mxu0 0
    %475 = vmatpush1.bf16.msra.mxu0 0
    %476 = vmatprep.subr.bf16.mxu0 0
    %477 = vmatpush1.bf16.msra.mxu0 0
    %478 = vmatprep.mubr.bf16.mxu0 0
    %479 = vmatmul.mubr.bf16.gmra.mrb[0].mxu0 %v438
    %v480 = vpop.f32.mrb[0].mxu0
    %v481 = vadd.f32 %v385, %v480
    %v482 = vpop.f32.mrb[0].mxu0
    %v483 = vpop.f32.mrb[0].mxu0
    %v484 = vadd.f32 %v390, %v483
    %v485 = vpop.f32.mrb[0].mxu0
    %486 = vmatprep.mubr.bf16.mxu0 0
    %487 = vmatmul.mubr.bf16.gmra.mrb[0].mxu0 %v439
    %v488 = vpop.f32.mrb[0].mxu0
    %v489 = vadd.f32 %v395, %v488
    %v490 = vpop.f32.mrb[0].mxu0
    %v491 = vpop.f32.mrb[0].mxu0
    %v492 = vadd.f32 %v400, %v491
    %v493 = vpop.f32.mrb[0].mxu0
    %494 = vmatprep.mubr.bf16.mxu0 0
    %495 = vmatmul.mubr.bf16.gmra.mrb[0].mxu0 %v440
    %v496 = vpop.f32.mrb[0].mxu0
    %v497 = vadd.f32 %v405, %v496
    %v498 = vpop.f32.mrb[0].mxu0
    %v499 = vpop.f32.mrb[0].mxu0
    %v500 = vadd.f32 %v410, %v499
    %v501 = vpop.f32.mrb[0].mxu0
    %502 = vmatprep.mubr.bf16.mxu0 0
    %503 = vmatmul.mubr.bf16.gmra.mrb[0].mxu0 %v441
    %v504 = vpop.f32.mrb[0].mxu0
    %v505 = vadd.f32 %v415, %v504
    %v506 = vpop.f32.mrb[0].mxu0
    %v507 = vpop.f32.mrb[0].mxu0
    %v508 = vadd.f32 %v420, %v507
    %v509 = vpop.f32.mrb[0].mxu0
    %510 = vdwg.mxu0
    %vm511 = vcmp.gt.f32.partialorder %v481, 0.0
    %vm512 = vcmp.gt.f32.partialorder %v484, 0.0
    %vm513 = vcmp.gt.f32.partialorder %v489, 0.0
    %vm514 = vcmp.gt.f32.partialorder %v492, 0.0
    %vm515 = vcmp.gt.f32.partialorder %v497, 0.0
    %vm516 = vcmp.gt.f32.partialorder %v500, 0.0
    %vm517 = vcmp.gt.f32.partialorder %v505, 0.0
    %vm518 = vcmp.gt.f32.partialorder %v508, 0.0
    %v519 = vmul.f32 %v481, 0.2
    %v520 = vmul.f32 %v484, 0.2
    %v521 = vmul.f32 %v489, 0.2
    %v522 = vmul.f32 %v492, 0.2
    %v523 = vmul.f32 %v497, 0.2
    %v524 = vmul.f32 %v500, 0.2
    %v525 = vmul.f32 %v505, 0.2
    %v526 = vmul.f32 %v508, 0.2
    %v527 = vsel %vm511, %v481, %v519
    %v528 = vsel %vm512, %v484, %v520
    %v529 = vsel %vm513, %v489, %v521
    %v530 = vsel %vm514, %v492, %v522
    %v531 = vsel %vm515, %v497, %v523
    %v532 = vsel %vm516, %v500, %v524
    %v533 = vsel %vm517, %v505, %v525
    %v534 = vsel %vm518, %v508, %v526
    %v535 = vld [vmem:[%s5] sm:$0xff]
    %v536 = vld [vmem:[%s5 + $0x8] sm:$0xff]
    %v537 = vld [vmem:[%s5 + $0x10] sm:$0xff]
    %v538 = vld [vmem:[%s5 + $0x18] sm:$0xff]
    %v539 = vld [vmem:[%s5 + $0x20] sm:$0xff]
    %v540 = vld [vmem:[%s5 + $0x28] sm:$0xff]
    %v541 = vld [vmem:[%s5 + $0x30] sm:$0xff]
    %v542 = vld [vmem:[%s5 + $0x38] sm:$0xff]
    %544 = vset.pattern.permute.xlu0 0
    %545 = vperm.xlu0 %544, %v535
    %v546 = vpop.permute.xlu0 %545
    %549 = vset.pattern.permute.xlu0 0
    %550 = vperm.xlu0 %549, %v536
    %v551 = vpop.permute.xlu0 %550
    %554 = vset.pattern.permute.xlu0 0
    %555 = vperm.xlu0 %554, %v537
    %v556 = vpop.permute.xlu0 %555
    %559 = vset.pattern.permute.xlu0 0
    %560 = vperm.xlu0 %559, %v538
    %v561 = vpop.permute.xlu0 %560
    %564 = vset.pattern.permute.xlu0 0
    %565 = vperm.xlu0 %564, %v539
    %v566 = vpop.permute.xlu0 %565
    %569 = vset.pattern.permute.xlu0 0
    %570 = vperm.xlu0 %569, %v540
    %v571 = vpop.permute.xlu0 %570
    %574 = vset.pattern.permute.xlu0 0
    %575 = vperm.xlu0 %574, %v541
    %v576 = vpop.permute.xlu0 %575
    %579 = vset.pattern.permute.xlu0 0
    %580 = vperm.xlu0 %579, %v542
    %v581 = vpop.permute.xlu0 %580
    %v583 = vmul.f32 %v527, %v546
    %v584 = vmul.f32 %v528, %v551
    %v585 = vmul.f32 %v529, %v556
    %v586 = vmul.f32 %v530, %v561
    %v587 = vmul.f32 %v531, %v566
    %v588 = vmul.f32 %v532, %v571
    %v589 = vmul.f32 %v533, %v576
    %v590 = vmul.f32 %v534, %v581
    %v591 = vadd.f32 %v583, %v584
    %v592 = vadd.f32 %v591, %v585
    %v593 = vadd.f32 %v592, %v586
    %v594 = vadd.f32 %v593, %v587
    %v595 = vadd.f32 %v594, %v588
    %v596 = vadd.f32 %v595, %v589
    %v597 = vadd.f32 %v596, %v590
    %v598 = vrot.slane %v597, 4
    %v599 = vadd.f32 %v597, %v598
    %v600 = vrot.slane %v599, 2
    %v601 = vadd.f32 %v599, %v600
    %v602 = vrot.slane %v601, 1
    %v603 = vadd.f32 %v601, %v602
    %s604 = sld [smem:[#allocation2]]
    %v605 = vstv %s604
    %v606 = vadd.f32 %v603, %v605
    %v607 = vsub.f32 0.0, %v606
    %v608 = vmul.f32 %v607, 1.442695
    %v609 = vpow.pop %v608
    %v610 = vadd.f32 %v609, 1.0
    %v611 = vrcp.pop %v610
    %612 = vst [vmem:[#allocation3] sm:$0x1] %v611
    // Predicated region
    $region30: #{tpu_custom_call.1} parent=1 // pred_check
      _
    $region31: #{tpu_custom_call.1} parent=1 // pred_check_branch
      %614 = sbr.rel (0) target = $region33
    $region32: #{tpu_custom_call.1} parent=1 // pred_region
      %s616 = ssub.s32 16, 16
      %617 = vsyncadd [#allocation4], %s616
      %s619 = sshll.u32 [#allocation3], 4
      %s620 = int_to_ptr.vmem [resolvable:$true] %s619
      %622 = dma.vmem_to_hbm [thread:$0]  %s620, 16, %s7, [#allocation4]
    $region33: #{tpu_custom_call.1} parent=1 // pred_fallthru
      _
    // Predicated region
    $region34: #{tpu_custom_call.1} parent=1 // pred_check
      _
    $region35: #{tpu_custom_call.1} parent=1 // pred_check_branch
      %624 = sbr.rel (0) target = $region37
    $region36: #{tpu_custom_call.1} parent=1 // pred_region
      %625 = dma.done [#allocation4], 16
    $region37: #{tpu_custom_call.1} parent=1 // pred_fallthru
      _
    %626 = vsyncpa [#allocation4], 1

</llo_original>
